<compile_context>
chip_gen: v5e
topology: v5e:2x2
jax: 0.10.0
libtpu: 0.0.40
codegen_flags: <defaults>
</compile_context>

<pallas_src>
import functools

import jax
import jax.numpy as jnp
from jax.experimental import pallas as pl
from jax.experimental.pallas import tpu as pltpu


def _round_up(x: int, m: int) -> int:
    return ((x + m - 1) // m) * m


def _choose_tile(M: int, tile_m: int, *, min_steps: int = 8, align: int = 16,
                 floor: int = 512) -> int:
    """Largest M-tile <= tile_m that (a) keeps >= min_steps grid steps when M is
    large (so v7x's two TensorCores both get work on the 'parallel' axis) and
    (b) moves at least ~floor rows per step to amortize the ~0.35us/step
    pipeline overhead."""
    per_step = _round_up(pl.cdiv(M, min_steps), align)
    tile = min(tile_m, max(per_step, floor))
    tile = max(tile, align)
    if tile >= M:
        # Single block covering the whole array; block dim == full array dim
        # keeps the BlockSpec legal even when M isn't sublane-aligned.
        return M
    return tile


def _uppool_linear_kernel(x_ref, w_ref, b_ref, o_ref, *, compute_dtype):
    # x_ref: (TILE_M, Din) [input dtype]   w_ref: (Din, Dout) [input dtype]
    # b_ref: (1, Dout)     [f32]           o_ref: (TILE_M, Dout) [out dtype]
    x = x_ref[...]
    w = w_ref[...]
    if compute_dtype is not None:
        # In-kernel cast: free VPU work under an HBM-bound pipeline; avoids a
        # separate XLA convert pass over x in HBM.
        if x.dtype != compute_dtype:
            x = x.astype(compute_dtype)
        if w.dtype != compute_dtype:
            w = w.astype(compute_dtype)
    acc = jnp.dot(x, w, preferred_element_type=jnp.float32)   # MXU, f32 acc
    acc = acc + b_ref[...]                                     # f32 bias (VPU)
    o_ref[...] = acc.astype(o_ref.dtype)


def uppool_linear(x2d, w, b, *, compute_dtype=jnp.bfloat16, out_dtype=None,
                  tile_m=8192):
    """x2d: (M, Din) ; w: (Din, Dout) ; b: (Dout,) -> (M, Dout)

    Tiled over M (ragged last tile handled by the pipeline, no pad/slice);
    weight/bias stay resident across the grid.
    """
    M, Din = x2d.shape
    Dout = w.shape[1]
    out_dtype = out_dtype if out_dtype is not None else x2d.dtype

    b2d = b.reshape(1, Dout).astype(jnp.float32)

    tile = _choose_tile(M, tile_m)
    grid = (pl.cdiv(M, tile),)

    itemsize = lambda dt: jnp.dtype(dt).itemsize
    bytes_accessed = (M * Din * itemsize(x2d.dtype)          # x read
                      + Din * Dout * itemsize(w.dtype)       # W read (resident)
                      + Dout * 4                             # bias read
                      + M * Dout * itemsize(out_dtype))      # out write
    cost = pl.CostEstimate(flops=2 * M * Din * Dout,
                           transcendentals=0,
                           bytes_accessed=bytes_accessed)

    kernel = functools.partial(_uppool_linear_kernel, compute_dtype=compute_dtype)

    return pl.pallas_call(
        kernel,
        out_shape=jax.ShapeDtypeStruct((M, Dout), out_dtype),
        grid=grid,
        in_specs=[
            pl.BlockSpec((tile, Din), lambda i: (i, 0)),   # x: tiled over M
            pl.BlockSpec((Din, Dout), lambda i: (0, 0)),   # W: resident
            pl.BlockSpec((1, Dout), lambda i: (0, 0)),     # bias: resident
        ],
        out_specs=pl.BlockSpec((tile, Dout), lambda i: (i, 0)),   # lane-dense 128
        compiler_params=pltpu.CompilerParams(
            dimension_semantics=("parallel",)),            # megacore on v7x
        cost_estimate=cost,
    )(x2d, w, b2d)


class UpPool:
    """JAX/Pallas port of sashimi.UpPool forward (== no_shift)."""

    def __init__(self, signal_dim: int, pooling_factor: int = 4,
                 expansion_factor: int = 2, key=None, dtype=jnp.float32,
                 compute_dtype=jnp.bfloat16, out_dtype=None):
        self.signal_dim = signal_dim
        self.pooling_factor = pooling_factor
        self.expansion_factor = expansion_factor
        self.compute_dtype = compute_dtype   # None -> full f32 compute path
        self.out_dtype = out_dtype           # None -> match input dtype
        in_features = signal_dim * expansion_factor
        out_features = signal_dim * pooling_factor
        if key is None:
            key = jax.random.PRNGKey(0)
        kw, kb = jax.random.split(key)
        # Deterministic init mimicking nn.Linear's U(-1/sqrt(fan_in), 1/sqrt(fan_in)).
        bound = 1.0 / float(jnp.sqrt(jnp.asarray(in_features, jnp.float32)))
        # PyTorch stores weight as (out, in); keep (in, out) so the kernel does x @ W.
        self.weight = jax.random.uniform(
            kw, (in_features, out_features), dtype, minval=-bound, maxval=bound)
        self.bias = jax.random.uniform(
            kb, (out_features,), dtype, minval=-bound, maxval=bound)

    @functools.partial(jax.jit, static_argnums=0)
    def __call__(self, x):
        # x: (B, T_in, signal_dim * expansion_factor)
        B, T_in, D_in = x.shape
        assert D_in == self.signal_dim * self.expansion_factor
        x2d = x.reshape(B * T_in, D_in)                        # metadata only
        y2d = uppool_linear(x2d, self.weight, self.bias,
                            compute_dtype=self.compute_dtype,
                            out_dtype=self.out_dtype if self.out_dtype is not None
                            else x.dtype)                      # (B*T_in, H*p)
        H_out = self.signal_dim * self.pooling_factor
        y = y2d.reshape(B, T_in, H_out)
        # torch: y.reshape(-1, T*p, H/p) — contiguous split of the feature dim
        # as (p, H/p), H/p fastest, exactly as below.
        # TODO(synk): verify in HLO that this minor-dim 128 -> 32 reshape stays
        # metadata-only on TPU; if it lowers to a relayout copy, keep consumers
        # on the (..., 128) view instead of materializing (..., 32).
        return y.reshape(B, T_in * self.pooling_factor,
                         H_out // self.pooling_factor)


def _reference(x, w, b, pooling_factor, compute_dtype=None):
    """Pure-JAX reference. If compute_dtype is given, mimic the kernel's
    rounded operands (f32 accumulation)."""
    if compute_dtype is not None:
        x = x.astype(compute_dtype).astype(jnp.float32)
        w = w.astype(compute_dtype).astype(jnp.float32)
    y = jnp.einsum("btd,de->bte", x, w,
                   preferred_element_type=jnp.float32) + b.astype(jnp.float32)
    B, T, H = y.shape
    return y.reshape(B, T * pooling_factor, H // pooling_factor)


if __name__ == "__main__":
    key = jax.random.PRNGKey(0)
    k_param, k_x, k_x2 = jax.random.split(key, 3)

    signal_dim = 32
    pooling_factor = 4
    expansion_factor = 2
    B, T_in = 2, 8                       # input time axis is T/p

    module = UpPool(signal_dim, pooling_factor, expansion_factor, key=k_param)

    x = jax.random.normal(
        k_x, (B, T_in, signal_dim * expansion_factor), dtype=jnp.float32)

    out = jax.block_until_ready(module(x))
    assert out.shape == (B, T_in * pooling_factor, signal_dim), out.shape

    # Tight check vs. a reference using the same bf16-rounded operands.
    ref_bf16 = _reference(x, module.weight, module.bias, pooling_factor,
                          compute_dtype=jnp.bfloat16)
    assert jnp.allclose(out.astype(jnp.float32), ref_bf16, atol=1e-3, rtol=1e-3)

    # Loose check vs. the full-precision f32 reference (semantics check).
    ref_f32 = _reference(x, module.weight, module.bias, pooling_factor)
    assert jnp.allclose(out.astype(jnp.float32), ref_f32, atol=2e-2, rtol=2e-2)

    # Ragged-M check: M = 600 rows -> tile 512, grid 2, partial last block
    # (no pad pass on the input, no slice pass on the output).
    B2, T2 = 2, 300
    x_odd = jax.random.normal(
        k_x2, (B2, T2, signal_dim * expansion_factor), dtype=jnp.float32)
    out_odd = jax.block_until_ready(module(x_odd))
    assert out_odd.shape == (B2, T2 * pooling_factor, signal_dim), out_odd.shape
    ref_odd = _reference(x_odd, module.weight, module.bias, pooling_factor,
                         compute_dtype=jnp.bfloat16)
    assert jnp.allclose(out_odd.astype(jnp.float32), ref_odd, atol=1e-3, rtol=1e-3)

    print("KERNEL_OK")
</pallas_src>

<mosaic_0001>
module attributes {stable_mosaic.version = 11 : i64} {
  func.func @_uppool_linear_kernel(%arg0: i32, %arg1: memref<16x64xf32, #tpu.memory_space<vmem>>, %arg2: memref<64x128xf32, #tpu.memory_space<vmem>>, %arg3: memref<1x128xf32, #tpu.memory_space<vmem>>, %arg4: memref<16x128xf32, #tpu.memory_space<vmem>>) attributes {dimension_semantics = [#tpu.dimension_semantics<parallel>], iteration_bounds = array<i64: 1>, scalar_prefetch = 0 : i64, scratch_operands = 0 : i64, tpu.core_type = #tpu.core_type<tc>, window_params = [{transform_indices = @transform_0, window_bounds = array<i64: 16, 64>}, {pipeline_mode = #tpu.pipeline_mode<synchronous>, transform_indices = @transform_1, window_bounds = array<i64: 64, 128>}, {pipeline_mode = #tpu.pipeline_mode<synchronous>, transform_indices = @transform_2, window_bounds = array<i64: 1, 128>}, {transform_indices = @transform_3, window_bounds = array<i64: 16, 128>}]} {
    %c0 = arith.constant 0 : index
    %c0_0 = arith.constant 0 : index
    %0 = vector.load %arg1[%c0, %c0_0] : memref<16x64xf32, #tpu.memory_space<vmem>>, vector<16x64xf32>
    %c0_1 = arith.constant 0 : index
    %c0_2 = arith.constant 0 : index
    %1 = vector.load %arg2[%c0_1, %c0_2] : memref<64x128xf32, #tpu.memory_space<vmem>>, vector<64x128xf32>
    %2 = arith.truncf %0 : vector<16x64xf32> to vector<16x64xbf16>
    %3 = arith.truncf %1 : vector<64x128xf32> to vector<64x128xbf16>
    %cst = arith.constant dense<0.000000e+00> : vector<16x128xf32>
    %4 = tpu.matmul %2, %3, %cst {dimension_numbers = #tpu.dot_dimension_numbers<[1], [0], [0], [1], [0, 0, 1, 1], [], []>} : vector<16x64xbf16>, vector<64x128xbf16>, vector<16x128xf32> -> vector<16x128xf32>
    %c0_3 = arith.constant 0 : index
    %c0_4 = arith.constant 0 : index
    %5 = vector.load %arg3[%c0_3, %c0_4] : memref<1x128xf32, #tpu.memory_space<vmem>>, vector<1x128xf32>
    %6 = vector.broadcast %5 : vector<1x128xf32> to vector<16x128xf32>
    %7 = arith.addf %4, %6 : vector<16x128xf32>
    %c0_5 = arith.constant 0 : index
    %c0_6 = arith.constant 0 : index
    %8 = vector.load %arg4[%c0_5, %c0_6] : memref<16x128xf32, #tpu.memory_space<vmem>>, vector<16x128xf32>
    tpu.vector_store %arg4[%c0_5, %c0_6], %7 {strides = array<i32>} : memref<16x128xf32, #tpu.memory_space<vmem>>, vector<16x128xf32>,
    return
  }
  func.func @transform_0(%arg0: i32) -> (i32, i32) {
    %c0_i32 = arith.constant 0 : i32
    %c0_i32_0 = arith.constant 0 : i32
    return %arg0, %c0_i32 : i32, i32
  }
  func.func @transform_1(%arg0: i32) -> (i32, i32) {
    %c0_i32 = arith.constant 0 : i32
    %c0_i32_0 = arith.constant 0 : i32
    %c0_i32_1 = arith.constant 0 : i32
    return %c0_i32, %c0_i32_0 : i32, i32
  }
  func.func @transform_2(%arg0: i32) -> (i32, i32) {
    %c0_i32 = arith.constant 0 : i32
    %c0_i32_0 = arith.constant 0 : i32
    %c0_i32_1 = arith.constant 0 : i32
    return %c0_i32, %c0_i32_0 : i32, i32
  }
  func.func @transform_3(%arg0: i32) -> (i32, i32) {
    %c0_i32 = arith.constant 0 : i32
    %c0_i32_0 = arith.constant 0 : i32
    return %arg0, %c0_i32 : i32, i32
  }
}

</mosaic_0001>

<llo_original>
// kernel: a_call__.1
$region0: #{a_call__.1}
  #allocation0 [shape = 'u32[]', space=smem, size = 0x4, offset = 0x4, fixed_abs, tag = 'smem constant byte address 0x4 - core index']
  #allocation1 [shape = 'u32[72,128]{1,0:T(1,128)}', space=vmem, size = 0x9000, scoped, tag = 'internal scratch']
  %s0 = inlined_call_operand.hbm [shape: f32[16,64], index: 0, kind: input, shape index: {}]
  %s1 = inlined_call_operand.hbm [shape: f32[64,128], index: 1, kind: input, shape index: {}]
  %s2 = inlined_call_operand.vmem [shape: f32[1,128], index: 2, kind: input, shape index: {}]
  %s3 = inlined_call_operand.vmem [shape: f32[16,128], index: 3, kind: output, shape index: {}]
  %s4 = sld [smem:[#allocation0]]
  $region30: #{a_call__.1} parent=0
    _
  %s6 = ssub.s32 1, %s4
  %s7 = scalar_select 0, %s6, %s4
  $region1: #{a_call__.1} parent=0
    #allocation2 [shape = 'u8[8192]{0}', space=vmem, size = 0x2000, scoped, tag = 'input window, operand 0, single buffered']
    #allocation3 [shape = 's32[1]{0}', space=sflag, size = 0x4, scoped, tag = 'scoped memory for a_call__.1']
    #allocation4 [shape = 'u8[32768]{0}', space=vmem, size = 0x8000, scoped, tag = 'input window, operand 1, single buffered']
    #allocation5 [shape = 's32[1]{0}', space=sflag, size = 0x4, scoped, tag = 'scoped memory for a_call__.1']
    %8 = vsyncpa [#allocation3], 0
    %9 = vsyncpa [#allocation5], 0
    // Predicated region
    $region2: #{a_call__.1} parent=1 // pred_check
      _
    $region3: #{a_call__.1} parent=1 // pred_check_branch
      %11 = sbr.rel (0) target = $region5
    $region4: #{a_call__.1} parent=1 // pred_region
      %13 = vsyncadd [#allocation3], 0
      %s14 = sshll.u32 %s0, 4
      %s15 = int_to_ptr.hbm [resolvable:$true] %s14
      %s16 = sshll.u32 [#allocation2], 4
      %s17 = int_to_ptr.vmem [resolvable:$true] %s16
      %22 = dma.hbm_to_vmem [thread:$0]  %s15, 256, %s17, [#allocation3], 128, 128, 8
    $region5: #{a_call__.1} parent=1 // pred_fallthru
      _
    // Predicated region
    $region6: #{a_call__.1} parent=1 // pred_check
      _
    $region7: #{a_call__.1} parent=1 // pred_check_branch
      %24 = sbr.rel (0) target = $region9
    $region8: #{a_call__.1} parent=1 // pred_region
      %26 = vsyncadd [#allocation5], 0
      %s27 = sshll.u32 %s1, 4
      %s28 = int_to_ptr.hbm [resolvable:$true] %s27
      %s29 = sshll.u32 [#allocation4], 4
      %s30 = int_to_ptr.vmem [resolvable:$true] %s29
      %35 = dma.hbm_to_vmem [thread:$0]  %s28, 1024, %s30, [#allocation5], 128, 128, 8
    $region9: #{a_call__.1} parent=1 // pred_fallthru
      _
    // Predicated region
    $region10: #{a_call__.1} parent=1 // pred_check
      _
    $region11: #{a_call__.1} parent=1 // pred_check_branch
      %37 = sbr.rel (0) target = $region13
    $region12: #{a_call__.1} parent=1 // pred_region
      _
    $region13: #{a_call__.1} parent=1 // pred_fallthru
      _
    // Predicated region
    $region14: #{a_call__.1} parent=1 // pred_check
      _
    $region15: #{a_call__.1} parent=1 // pred_check_branch
      %39 = sbr.rel (0) target = $region17
    $region16: #{a_call__.1} parent=1 // pred_region
      %41 = dma.done [#allocation3], 256
    $region17: #{a_call__.1} parent=1 // pred_fallthru
      _
    // Predicated region
    $region18: #{a_call__.1} parent=1 // pred_check
      _
    $region19: #{a_call__.1} parent=1 // pred_check_branch
      %43 = sbr.rel (0) target = $region21
    $region20: #{a_call__.1} parent=1 // pred_region
      %45 = dma.done [#allocation5], 1024
    $region21: #{a_call__.1} parent=1 // pred_fallthru
      _
    %v47 = vld [vmem:[#allocation2] sm:$0xff]
    %v48 = vld [vmem:[#allocation2 + $0x8] sm:$0xff]
    %v49 = vld [vmem:[#allocation4] sm:$0xff]
    %v50 = vld [vmem:[#allocation4 + $0x8] sm:$0xff]
    %v51 = vld [vmem:[#allocation4 + $0x10] sm:$0xff]
    %v52 = vld [vmem:[#allocation4 + $0x18] sm:$0xff]
    %v53 = vld [vmem:[#allocation4 + $0x20] sm:$0xff]
    %v54 = vld [vmem:[#allocation4 + $0x28] sm:$0xff]
    %v55 = vld [vmem:[#allocation4 + $0x30] sm:$0xff]
    %v56 = vld [vmem:[#allocation4 + $0x38] sm:$0xff]
    %v57 = vpack.c.bf16 %v48, %v47
    %v58 = vpack.c.bf16 %v50, %v49
    %v59 = vpack.c.bf16 %v52, %v51
    %v60 = vpack.c.bf16 %v54, %v53
    %v61 = vpack.c.bf16 %v56, %v55
    %v62 = vld [vmem:[%s2] sm:$0x1]
    %v64 = vperm.slane %v62, 0
    %vm66 = vcmask 523264
    %v68 = vsel %vm66, %v57, 0
    %70 = vmatpush.bf16.msra.mxu0 0
    %71 = vmatpush.bf16.msra.mxu0 0
    %72 = vmatpush.bf16.msra.mxu0 0
    %73 = vmatpush.bf16.msra.mxu0 0
    %74 = vmatpush.bf16.msra.mxu0 %v61
    %75 = vmatpush.bf16.msra.mxu0 %v60
    %76 = vmatpush.bf16.msra.mxu0 %v59
    %77 = vmatpush.bf16.msra.mxu0 %v58
    %78 = vmatmul.bf16.gmra.mxu0 %v68
    %v79 = vpop.f32.mrf.mxu0
    %v80 = vadd.f32 %v64, %v79
    %v81 = vpop.f32.mrf.mxu0
    %v82 = vadd.f32 %v64, %v81
    %83 = vdwg.mxu0
    %84 = vst [vmem:[%s3] sm:$0xff] %v80
    %85 = vst [vmem:[%s3 + $0x8] sm:$0xff] %v82
    // Predicated region
    $region22: #{a_call__.1} parent=1 // pred_check
      _
    $region23: #{a_call__.1} parent=1 // pred_check_branch
      %87 = sbr.rel (0) target = $region25
    $region24: #{a_call__.1} parent=1 // pred_region
      _
    $region25: #{a_call__.1} parent=1 // pred_fallthru
      _
    // Predicated region
    $region26: #{a_call__.1} parent=1 // pred_check
      _
    $region27: #{a_call__.1} parent=1 // pred_check_branch
      %89 = sbr.rel (0) target = $region29
    $region28: #{a_call__.1} parent=1 // pred_region
      _
    $region29: #{a_call__.1} parent=1 // pred_fallthru
      _
    %90 = vsyncpa [#allocation3], 1
    %91 = vsyncpa [#allocation5], 1

</llo_original>
